<compile_context>
chip_gen: v7x
topology: tpu7x:2x2x1
jax: 0.10.0
libtpu: 0.0.40
codegen_flags: <defaults>
</compile_context>

<pallas_src>
import functools

import jax
import jax.numpy as jnp
from jax.experimental import pallas as pl
from jax.experimental.pallas import tpu as pltpu

LANE = 128
# Combined input bytes fetched per grid step (~1 MiB per input at f32).
TARGET_STEP_BYTES = 2 * 1024 * 1024


def _round_up(v, m):
    return (v + m - 1) // m * m


def _sublane_align(dtype):
    # Minimum sublane tile: 8 for 4-byte, 16 for 2-byte, 32 for 1-byte dtypes.
    return max(8, 32 // jnp.dtype(dtype).itemsize)


def _wbce_kernel(x_ref, t_ref, out_ref, *,
                 weight_zero, weight_one, tile_rows, rows_in_last_block,
                 binary_targets):
    # Cast to f32 on the VPU (inputs may arrive as bf16 etc. — halves DMA bytes).
    x = x_ref[...].astype(jnp.float32)
    t = t_ref[...].astype(jnp.float32)
    x = jnp.clip(x, 1e-7, 1.0 - 1e-7)

    if binary_targets:
        # Single-log fast path (valid only for hard 0/1 targets; opt-in).
        pos = t >= 0.5
        wb = -jnp.where(pos, weight_zero, weight_one) * jnp.log(jnp.where(pos, x, 1.0 - x))
    else:
        # General (soft-target) path, algebraically identical to the PyTorch forward
        # but with the weight/BCE algebra fused to cut VALU ops:
        #   bce = -t*log(x) - (1-t)*log(1-x) = -(ly + t*(lx - ly))
        #   w   = t*w0 + (1-t)*w1            = w1 + t*(w0 - w1)
        lx = jnp.log(x)
        ly = jnp.log(1.0 - x)
        w = weight_one + t * (weight_zero - weight_one)
        wb = w * -(ly + t * (lx - ly))

    def _reduce(v):
        # (tile_rows, 128) -> (8, 128): pure leading-axis VPU adds; the cross-sublane /
        # cross-lane reduction happens once in the wrapper on a tiny array.
        return jnp.sum(v.reshape(tile_rows // 8, 8, LANE), axis=0).reshape(1, 8, LANE)

    if rows_in_last_block == tile_rows:
        # Every block is full: no masking code is even traced.
        out_ref[...] = _reduce(wb)
    else:
        i = pl.program_id(0)
        last = pl.num_programs(0) - 1

        @pl.when(i != last)
        def _():
            out_ref[...] = _reduce(wb)

        @pl.when(i == last)
        def _():
            # Only the final (partial) block pays for the iota/compare/select.
            row = jax.lax.broadcasted_iota(jnp.int32, (tile_rows, LANE), 0)
            out_ref[...] = _reduce(jnp.where(row < rows_in_last_block, wb, 0.0))


def _wbce_sum_jax(x, t, weight_zero, weight_one):
    """Pure-JAX sum of weighted BCE for the tiny ragged tail (< 128 elements)."""
    x = jnp.clip(x.astype(jnp.float32), 1e-7, 1.0 - 1e-7)
    t = t.astype(jnp.float32)
    bce = -t * jnp.log(x) - (1.0 - t) * jnp.log(1.0 - x)
    w = t * weight_zero + (1.0 - t) * weight_one
    return jnp.sum(w * bce, dtype=jnp.float32)


def weighted_bce_loss(inputs, targets, weight_zero, weight_one, *, binary_targets=False):
    """Mean of weighted binary cross-entropy; matches the PyTorch forward."""
    assert inputs.shape == targets.shape
    n = inputs.size
    assert n > 0
    weight_zero = float(weight_zero)
    weight_one = float(weight_one)

    x = inputs.reshape(-1)   # free (contiguous) reshape
    t = targets.reshape(-1)

    rows = n // LANE
    rem = n - rows * LANE

    total = jnp.float32(0.0)

    if rows > 0:
        n_main = rows * LANE
        if rem == 0:
            xm, tm = x, t                      # zero-copy: full buffer goes to the kernel
        else:
            # NOTE: XLA materializes this prefix slice (one extra copy); unavoidable
            # without manual HBM DMA.  The aligned (rem == 0) case pays nothing.
            xm, tm = x[:n_main], t[:n_main]
        x2d = xm.reshape(rows, LANE)
        t2d = tm.reshape(rows, LANE)

        # Dtype-aware tile size: keep per-step DMA bytes roughly constant.
        bytes_per_row = LANE * (jnp.dtype(x.dtype).itemsize + jnp.dtype(t.dtype).itemsize)
        tile_rows = max(256, (TARGET_STEP_BYTES // bytes_per_row) // 256 * 256)
        align = max(_sublane_align(x.dtype), _sublane_align(t.dtype))
        tile_rows = min(tile_rows, _round_up(rows, align))

        num_blocks = pl.cdiv(rows, tile_rows)
        rows_in_last_block = rows - (num_blocks - 1) * tile_rows

        kernel = functools.partial(
            _wbce_kernel,
            weight_zero=weight_zero,
            weight_one=weight_one,
            tile_rows=tile_rows,
            rows_in_last_block=rows_in_last_block,
            binary_targets=bool(binary_targets),
        )

        partials = pl.pallas_call(
            kernel,
            out_shape=jax.ShapeDtypeStruct((num_blocks, 8, LANE), jnp.float32),
            grid_spec=pltpu.PrefetchScalarGridSpec(
                num_scalar_prefetch=0,
                grid=(num_blocks,),
                in_specs=[
                    pl.BlockSpec((tile_rows, LANE), lambda i: (i, 0)),
                    pl.BlockSpec((tile_rows, LANE), lambda i: (i, 0)),
                ],
                # Per-tile lane-dense partial sums: independent blocks -> the single
                # grid axis is genuinely "parallel" (megacore-shardable on v7x).
                out_specs=pl.BlockSpec((1, 8, LANE), lambda i: (i, 0, 0)),
            ),
            compiler_params=pltpu.CompilerParams(
                dimension_semantics=("parallel",),
                vmem_limit_bytes=32 * 1024 * 1024,
            ),
        )(x2d, t2d)

        total = total + jnp.sum(partials, dtype=jnp.float32)

    if rem > 0:
        # Ragged tail: fewer than 128 elements, a few pure-JAX ops.
        total = total + _wbce_sum_jax(x[rows * LANE:], t[rows * LANE:],
                                      weight_zero, weight_one)

    return total / jnp.float32(n)


def weighted_bce_loss_ref(inputs, targets, weight_zero, weight_one):
    x = jnp.clip(inputs.astype(jnp.float32), 1e-7, 1.0 - 1e-7)
    t = targets.astype(jnp.float32)
    bce = -t * jnp.log(x) - (1.0 - t) * jnp.log(1.0 - x)
    weights = t * weight_zero + (1.0 - t) * weight_one
    return jnp.mean(weights * bce)


if __name__ == "__main__":
    key = jax.random.PRNGKey(0)
    k1, k2, k3, k4 = jax.random.split(key, 4)

    weight_zero = 0.3
    weight_one = 0.7

    # Case 1: segmentation-style prediction map, size a multiple of 128 (zero-copy path).
    shape = (2, 4, 16, 16)
    inputs = jax.random.uniform(k1, shape, dtype=jnp.float32)            # probabilities
    targets = (jax.random.uniform(k2, shape) > 0.5).astype(jnp.float32)  # binary labels

    out = jax.block_until_ready(weighted_bce_loss(inputs, targets, weight_zero, weight_one))
    ref = weighted_bce_loss_ref(inputs, targets, weight_zero, weight_one)
    assert jnp.allclose(out, ref, rtol=1e-4, atol=1e-5), (out, ref)

    # Case 2: ragged size (not a multiple of 128) — exercises the gated-mask partial
    # block in the kernel plus the pure-JAX tail.
    rshape = (5, 100)
    rin = jax.random.uniform(k3, rshape, dtype=jnp.float32)
    rtg = (jax.random.uniform(k4, rshape) > 0.5).astype(jnp.float32)
    rout = jax.block_until_ready(weighted_bce_loss(rin, rtg, weight_zero, weight_one))
    rref = weighted_bce_loss_ref(rin, rtg, weight_zero, weight_one)
    assert jnp.allclose(rout, rref, rtol=1e-4, atol=1e-5), (rout, rref)

    # Case 3: bf16 inputs passed natively (no wrapper upcast; cast happens in-kernel).
    bin_ = inputs.astype(jnp.bfloat16)
    bout = jax.block_until_ready(weighted_bce_loss(bin_, targets, weight_zero, weight_one))
    bref = weighted_bce_loss_ref(bin_, targets, weight_zero, weight_one)
    assert jnp.allclose(bout, bref, rtol=1e-4, atol=1e-5), (bout, bref)

    # Case 4: opt-in single-log fast path for hard binary targets.
    fout = jax.block_until_ready(
        weighted_bce_loss(inputs, targets, weight_zero, weight_one, binary_targets=True))
    assert jnp.allclose(fout, ref, rtol=1e-4, atol=1e-5), (fout, ref)

    print("KERNEL_OK")
</pallas_src>

<mosaic_0001>
module attributes {stable_mosaic.version = 11 : i64} {
  func.func @_wbce_kernel(%arg0: i32, %arg1: memref<16x128xf32, #tpu.memory_space<vmem>>, %arg2: memref<16x128xf32, #tpu.memory_space<vmem>>, %arg3: memref<1x8x128xf32, #tpu.memory_space<vmem>>) attributes {dimension_semantics = [#tpu.dimension_semantics<parallel>], iteration_bounds = array<i64: 1>, scalar_prefetch = 0 : i64, scratch_operands = 0 : i64, tpu.core_type = #tpu.core_type<tc>, window_params = [{transform_indices = @transform_0, window_bounds = array<i64: 16, 128>}, {transform_indices = @transform_1, window_bounds = array<i64: 16, 128>}, {transform_indices = @transform_2, window_bounds = array<i64: 1, 8, 128>}]} {
    %c0 = arith.constant 0 : index
    %c0_0 = arith.constant 0 : index
    %0 = vector.load %arg1[%c0, %c0_0] : memref<16x128xf32, #tpu.memory_space<vmem>>, vector<16x128xf32>
    %c0_1 = arith.constant 0 : index
    %c0_2 = arith.constant 0 : index
    %1 = vector.load %arg2[%c0_1, %c0_2] : memref<16x128xf32, #tpu.memory_space<vmem>>, vector<16x128xf32>
    %cst = arith.constant 1.000000e-07 : f32
    %cst_3 = arith.constant 0.99999988 : f32
    %2 = vector.broadcast %cst : f32 to vector<16x128xf32>
    %3 = arith.maximumf %2, %0 : vector<16x128xf32>
    %4 = vector.broadcast %cst_3 : f32 to vector<16x128xf32>
    %5 = arith.minimumf %4, %3 : vector<16x128xf32>
    %6 = math.log %5 : vector<16x128xf32>
    %cst_4 = arith.constant 1.000000e+00 : f32
    %7 = vector.broadcast %cst_4 : f32 to vector<16x128xf32>
    %8 = arith.subf %7, %5 : vector<16x128xf32>
    %9 = math.log %8 : vector<16x128xf32>
    %cst_5 = arith.constant -4.000000e-01 : f32
    %10 = vector.broadcast %cst_5 : f32 to vector<16x128xf32>
    %11 = arith.mulf %1, %10 : vector<16x128xf32>
    %cst_6 = arith.constant 0.699999988 : f32
    %12 = vector.broadcast %cst_6 : f32 to vector<16x128xf32>
    %13 = arith.addf %12, %11 : vector<16x128xf32>
    %14 = arith.subf %6, %9 : vector<16x128xf32>
    %15 = arith.mulf %1, %14 : vector<16x128xf32>
    %16 = arith.addf %9, %15 : vector<16x128xf32>
    %cst_7 = arith.constant 0.000000e+00 : f32
    %17 = vector.broadcast %cst_7 : f32 to vector<16x128xf32>
    %18 = arith.subf %17, %16 : vector<16x128xf32>
    %19 = arith.mulf %13, %18 : vector<16x128xf32>
    %20 = vector.shape_cast %19 : vector<16x128xf32> to vector<2x8x128xf32>
    %cst_8 = arith.constant dense<0.000000e+00> : vector<8x128xf32>
    %21 = vector.multi_reduction <add>, %20, %cst_8 [0] : vector<2x8x128xf32> to vector<8x128xf32>
    %22 = vector.shape_cast %21 : vector<8x128xf32> to vector<1x8x128xf32>
    %c0_9 = arith.constant 0 : index
    %c0_10 = arith.constant 0 : index
    %c0_11 = arith.constant 0 : index
    %23 = vector.load %arg3[%c0_9, %c0_10, %c0_11] : memref<1x8x128xf32, #tpu.memory_space<vmem>>, vector<1x8x128xf32>
    tpu.vector_store %arg3[%c0_9, %c0_10, %c0_11], %22 {strides = array<i32>} : memref<1x8x128xf32, #tpu.memory_space<vmem>>, vector<1x8x128xf32>,
    return
  }
  func.func @transform_0(%arg0: i32) -> (i32, i32) {
    %c0_i32 = arith.constant 0 : i32
    %c0_i32_0 = arith.constant 0 : i32
    return %arg0, %c0_i32 : i32, i32
  }
  func.func @transform_1(%arg0: i32) -> (i32, i32) {
    %c0_i32 = arith.constant 0 : i32
    %c0_i32_0 = arith.constant 0 : i32
    return %arg0, %c0_i32 : i32, i32
  }
  func.func @transform_2(%arg0: i32) -> (i32, i32, i32) {
    %c0_i32 = arith.constant 0 : i32
    %c0_i32_0 = arith.constant 0 : i32
    %c0_i32_1 = arith.constant 0 : i32
    return %arg0, %c0_i32, %c0_i32_0 : i32, i32, i32
  }
}

</mosaic_0001>

<llo_original>
// kernel: tpu_custom_call.1
$region0: #{tpu_custom_call.1}
  #allocation0 [shape = 'u32[]', space=smem, size = 0x4, offset = 0x4, fixed_abs, tag = 'smem constant byte address 0x4 - core index']
  #allocation1 [shape = 'u32[144,128]{1,0:T(1,128)}', space=vmem, size = 0x12000, scoped, tag = 'internal scratch']
  %s0 = inlined_call_operand.hbm [shape: f32[16,128], index: 0, kind: input, shape index: {}]
  %s1 = inlined_call_operand.hbm [shape: f32[16,128], index: 1, kind: input, shape index: {}]
  %s2 = inlined_call_operand.hbm [shape: f32[1,8,128], index: 2, kind: output, shape index: {}]
  %s3 = sld [smem:[#allocation0]]
  $region26: #{tpu_custom_call.1} parent=0
    _
  %s5 = ssub.s32 1, %s3
  %s6 = scalar_select 0, %s5, %s3
  $region1: #{tpu_custom_call.1} parent=0
    #allocation2 [shape = 'u8[8192]{0}', space=vmem, size = 0x2000, scoped, tag = 'input window, operand 0, single buffered']
    #allocation3 [shape = 's32[1]{0}', space=sflag, size = 0x4, scoped, tag = 'scoped memory for tpu_custom_call.1']
    #allocation4 [shape = 's32[1]{0}', space=sflag, size = 0x4, scoped, tag = 'scoped memory for tpu_custom_call.1']
    #allocation5 [shape = 'u8[8192]{0}', space=vmem, size = 0x2000, scoped, tag = 'input window, operand 1, single buffered']
    #allocation6 [shape = 's32[1]{0}', space=sflag, size = 0x4, scoped, tag = 'scoped memory for tpu_custom_call.1']
    #allocation7 [shape = 'u8[4096]{0}', space=vmem, size = 0x1000, scoped, tag = 'output window, operand 0, single buffered']
    %7 = vsyncpa [#allocation3], 0
    %8 = vsyncpa [#allocation6], 0
    %9 = vsyncpa [#allocation4], 0
    // Predicated region
    $region2: #{tpu_custom_call.1} parent=1 // pred_check
      _
    $region3: #{tpu_custom_call.1} parent=1 // pred_check_branch
      %11 = sbr.rel (0) target = $region5
    $region4: #{tpu_custom_call.1} parent=1 // pred_region
      %s13 = ssub.s32 256, 256
      %14 = vsyncadd [#allocation3], %s13
      %s15 = sshll.u32 [#allocation2], 4
      %s16 = int_to_ptr.vmem [resolvable:$true] %s15
      %21 = dma.hbm_to_vmem [thread:$0]  %s0, 256, %s16, [#allocation3], 128, 128, 8
    $region5: #{tpu_custom_call.1} parent=1 // pred_fallthru
      _
    // Predicated region
    $region6: #{tpu_custom_call.1} parent=1 // pred_check
      _
    $region7: #{tpu_custom_call.1} parent=1 // pred_check_branch
      %23 = sbr.rel (0) target = $region9
    $region8: #{tpu_custom_call.1} parent=1 // pred_region
      %s25 = ssub.s32 256, 256
      %26 = vsyncadd [#allocation6], %s25
      %s27 = sshll.u32 [#allocation5], 4
      %s28 = int_to_ptr.vmem [resolvable:$true] %s27
      %33 = dma.hbm_to_vmem [thread:$0]  %s1, 256, %s28, [#allocation6], 128, 128, 8
    $region9: #{tpu_custom_call.1} parent=1 // pred_fallthru
      _
    // Predicated region
    $region10: #{tpu_custom_call.1} parent=1 // pred_check
      _
    $region11: #{tpu_custom_call.1} parent=1 // pred_check_branch
      %35 = sbr.rel (0) target = $region13
    $region12: #{tpu_custom_call.1} parent=1 // pred_region
      %36 = dma.done [#allocation3], 256
    $region13: #{tpu_custom_call.1} parent=1 // pred_fallthru
      _
    // Predicated region
    $region14: #{tpu_custom_call.1} parent=1 // pred_check
      _
    $region15: #{tpu_custom_call.1} parent=1 // pred_check_branch
      %38 = sbr.rel (0) target = $region17
    $region16: #{tpu_custom_call.1} parent=1 // pred_region
      %39 = dma.done [#allocation6], 256
    $region17: #{tpu_custom_call.1} parent=1 // pred_fallthru
      _
    %v40 = vld [vmem:[#allocation2] sm:$0xff]
    %v41 = vld [vmem:[#allocation2 + $0x8] sm:$0xff]
    %v42 = vld [vmem:[#allocation5] sm:$0xff]
    %v43 = vld [vmem:[#allocation5 + $0x8] sm:$0xff]
    %v44 = vmax.f32 %v40, 1e-07
    %v45 = vmax.f32 %v41, 1e-07
    %v46 = vmin.f32 %v44, 0.9999999
    %v47 = vmin.f32 %v45, 0.9999999
    %v48 = vlog2.pop %v46
    %v49 = vmul.f32 %v48, 0.6931472
    %v50 = vlog2.pop %v47
    %v51 = vmul.f32 %v50, 0.6931472
    %v52 = vsub.f32 1.0, %v46
    %v53 = vsub.f32 1.0, %v47
    %v54 = vlog2.pop %v52
    %v55 = vmul.f32 %v54, 0.6931472
    %v56 = vlog2.pop %v53
    %v57 = vmul.f32 %v56, 0.6931472
    %v58 = vmul.f32 %v42, -0.4
    %v59 = vmul.f32 %v43, -0.4
    %v60 = vadd.f32 %v58, 0.7
    %v61 = vadd.f32 %v59, 0.7
    %v62 = vsub.f32 %v49, %v55
    %v63 = vsub.f32 %v51, %v57
    %v64 = vmul.f32 %v42, %v62
    %v65 = vmul.f32 %v43, %v63
    %v66 = vadd.f32 %v55, %v64
    %v67 = vadd.f32 %v57, %v65
    %v68 = vsub.f32 0.0, %v66
    %v69 = vsub.f32 0.0, %v67
    %v70 = vmul.f32 %v60, %v68
    %v71 = vmul.f32 %v61, %v69
    %v72 = vadd.f32 %v70, %v71
    %73 = vst [vmem:[#allocation7] sm:$0xff] %v72
    // Predicated region
    $region18: #{tpu_custom_call.1} parent=1 // pred_check
      _
    $region19: #{tpu_custom_call.1} parent=1 // pred_check_branch
      %75 = sbr.rel (0) target = $region21
    $region20: #{tpu_custom_call.1} parent=1 // pred_region
      %s77 = ssub.s32 128, 128
      %78 = vsyncadd [#allocation4], %s77
      %s80 = sshll.u32 [#allocation7], 4
      %s81 = int_to_ptr.vmem [resolvable:$true] %s80
      %83 = dma.vmem_to_hbm [thread:$0]  %s81, 128, %s2, [#allocation4]
    $region21: #{tpu_custom_call.1} parent=1 // pred_fallthru
      _
    // Predicated region
    $region22: #{tpu_custom_call.1} parent=1 // pred_check
      _
    $region23: #{tpu_custom_call.1} parent=1 // pred_check_branch
      %85 = sbr.rel (0) target = $region25
    $region24: #{tpu_custom_call.1} parent=1 // pred_region
      %86 = dma.done [#allocation4], 128
    $region25: #{tpu_custom_call.1} parent=1 // pred_fallthru
      _
    %87 = vsyncpa [#allocation3], 1
    %88 = vsyncpa [#allocation6], 1
    %89 = vsyncpa [#allocation4], 1

</llo_original>
